<compile_context>
chip_gen: v6e
topology: v6e:2x2x1
jax: 0.10.0
libtpu: 0.0.40
codegen_flags: <defaults>
</compile_context>

<pallas_src>
import functools

import jax
import jax.numpy as jnp
from jax.experimental import pallas as pl
from jax.experimental.pallas import tpu as pltpu


def _round_up(x: int, m: int) -> int:
    return ((x + m - 1) // m) * m


def _label_smooth_kernel(x_ref, t_ref, o_ref, *, eps: float, num_classes: int,
                         batch: int, tile_b: int, has_partial: bool):
    """One batch tile -> one partial sum of label-smoothed NLL."""
    x = x_ref[...].astype(jnp.float32)          # (tile_b, K) logits
    t = t_ref[...]                              # (tile_b, 1) int32 labels
    K = num_classes

    if has_partial:
        # Rows beyond the true batch in the (single) partial edge block hold
        # undefined VMEM contents; zero them before exp/log so no inf/NaN can
        # appear, then drop them from the tile sum below.
        row_ids = (pl.program_id(0) * tile_b
                   + jax.lax.broadcasted_iota(jnp.int32, (tile_b, 1), 0))
        valid = row_ids < batch                                  # (tile_b, 1)
        x = jnp.where(valid, x, 0.0)

    # Numerically-stable log-softmax summary stats; no (B, K) temporaries.
    m = jnp.max(x, axis=1, keepdims=True)                        # (tile_b, 1)
    z = x - m                                                    # (tile_b, K)
    lse = jnp.log(jnp.sum(jnp.exp(z), axis=1, keepdims=True))    # (tile_b, 1)

    # Fold the one-hot and uniform parts into one weighted lane reduction:
    #   row_loss = sum_k smoothed_k * (lse - z_k) = lse - sum_k w_k * z_k
    # since sum_k w_k == 1 with w_k = eps/K + (1 - eps) * [k == target].
    class_ids = jax.lax.broadcasted_iota(jnp.int32, z.shape, 1)
    base = eps / K
    w = jnp.where(class_ids == t, (1.0 - eps) + base, base)
    row_loss = lse - jnp.sum(w * z, axis=1, keepdims=True)       # (tile_b, 1)

    if has_partial:
        row_loss = jnp.where(valid, row_loss, 0.0)

    # One store per tile (partial sum) instead of tile_b 1-lane masked stores.
    o_ref[...] = jnp.sum(row_loss, axis=0, keepdims=True).reshape(1, 1, 1)


def label_smooth_loss(inputs: jax.Array, targets: jax.Array,
                      *, num_classes: int, eps: float = 0.1,
                      label_smooth: bool = True,
                      tile_b: int | None = None) -> jax.Array:
    """JAX/Pallas equivalent of LabelSmooth.forward.

    inputs:  (B, K) float logits (before softmax)
    targets: (B,)   integer class indices
    returns: scalar float32 loss
    """
    assert inputs.ndim == 2 and inputs.shape[1] == num_classes
    assert targets.ndim == 1 and targets.shape[0] == inputs.shape[0]
    eff_eps = float(eps) if label_smooth else 0.0

    B, K = inputs.shape
    itemsize = jnp.dtype(inputs.dtype).itemsize

    # Row alignment: sublane packing (8 f32 rows / 16 bf16 / 32 int8 rows).
    row_align = {1: 32, 2: 16}.get(itemsize, 8)

    # Tile rows from a byte budget (~8 MiB per logits block, no row cap).
    # Double-buffered this is ~16 MiB of VMEM: fine on v5e/v6e and well under
    # v7x's 64 MiB physical VMEM.
    auto_tile = tile_b is None
    if auto_tile:
        block_budget = 8 << 20
        tile_b = max(row_align, block_budget // max(1, K * itemsize))
    tile_b = max(row_align, (int(tile_b) // row_align) * row_align)
    tile_b = min(tile_b, _round_up(B, row_align))
    # v7x megacore: keep >= 2 grid steps when the batch is large enough.
    if auto_tile and tile_b >= B and B >= 2 * row_align:
        tile_b = _round_up(-(-B // 2), row_align)

    num_tiles = -(-B // tile_b)                  # cdiv, unpadded array
    has_partial = (B % tile_b) != 0

    block_bytes = tile_b * K * itemsize
    vmem_limit = int(min(48 << 20, max(32 << 20, 2 * block_bytes + (8 << 20))))

    t2d = targets.astype(jnp.int32).reshape(-1, 1)

    kernel = functools.partial(_label_smooth_kernel, eps=eff_eps,
                               num_classes=K, batch=B, tile_b=tile_b,
                               has_partial=has_partial)

    cost = pl.CostEstimate(
        flops=6 * B * K,
        transcendentals=B * K,
        bytes_accessed=B * K * itemsize + B * 4 + num_tiles * 4)

    # TODO(synk): for vocabularies so large that a single (tile_b, K) block
    # can't reach a multi-MiB size within VMEM, add an inner "arbitrary" K
    # axis with online-softmax running stats; unnecessary for typical heads.
    partial_sums = pl.pallas_call(
        kernel,
        grid=(num_tiles,),
        in_specs=[
            pl.BlockSpec((tile_b, K), lambda i: (i, 0)),     # logits tile
            pl.BlockSpec((tile_b, 1), lambda i: (i, 0)),     # labels tile
        ],
        out_specs=pl.BlockSpec((1, 1, 1), lambda i: (i, 0, 0)),
        out_shape=jax.ShapeDtypeStruct((num_tiles, 1, 1), jnp.float32),
        compiler_params=pltpu.CompilerParams(
            dimension_semantics=("parallel",),
            vmem_limit_bytes=vmem_limit),
        cost_estimate=cost,
    )(inputs, t2d)

    # Tiny (num_tiles-element) reduction + single divide by the true batch B.
    return jnp.sum(partial_sums) * (1.0 / B)


def _reference(inputs, targets, num_classes, eps):
    # Pure-JAX reference for sanity checking.
    logp = jax.nn.log_softmax(inputs.astype(jnp.float32), axis=1)
    onehot = jax.nn.one_hot(targets, num_classes, dtype=jnp.float32)
    smoothed = (1.0 - eps) * onehot + eps / num_classes
    return (-smoothed * logp).mean(0).sum()


if __name__ == "__main__":
    key = jax.random.PRNGKey(0)
    k1, k2, k3, k4 = jax.random.split(key, 4)
    eps = 0.1

    # Case 1: small, single tile (B=8, K=128).
    B1, K1 = 8, 128
    logits1 = jax.random.normal(k1, (B1, K1), dtype=jnp.float32)
    labels1 = jax.random.randint(k2, (B1,), 0, K1, dtype=jnp.int32)
    loss1 = jax.block_until_ready(
        label_smooth_loss(logits1, labels1, num_classes=K1, eps=eps))
    ref1 = _reference(logits1, labels1, K1, eps)
    assert jnp.allclose(loss1, ref1, atol=1e-5, rtol=1e-5), (loss1, ref1)

    # Case 2: B not a multiple of the tile, K not a multiple of 128
    # (exercises the unpadded partial edge block, lane-masked reductions and
    # a multi-step "parallel" grid with a forced small tile).
    B2, K2 = 20, 200
    logits2 = jax.random.normal(k3, (B2, K2), dtype=jnp.float32)
    labels2 = jax.random.randint(k4, (B2,), 0, K2, dtype=jnp.int32)
    loss2 = jax.block_until_ready(
        label_smooth_loss(logits2, labels2, num_classes=K2, eps=eps, tile_b=8))
    ref2 = _reference(logits2, labels2, K2, eps)
    assert jnp.allclose(loss2, ref2, atol=1e-5, rtol=1e-5), (loss2, ref2)

    # Case 3: auto tile size (byte-budget tiling + >=2-tile megacore split).
    loss2b = jax.block_until_ready(
        label_smooth_loss(logits2, labels2, num_classes=K2, eps=eps))
    assert jnp.allclose(loss2b, ref2, atol=1e-5, rtol=1e-5), (loss2b, ref2)

    # Case 4: label_smooth=False reduces to plain cross entropy.
    loss3 = jax.block_until_ready(
        label_smooth_loss(logits2, labels2, num_classes=K2, eps=eps,
                          label_smooth=False, tile_b=8))
    ref3 = _reference(logits2, labels2, K2, 0.0)
    assert jnp.allclose(loss3, ref3, atol=1e-5, rtol=1e-5), (loss3, ref3)

    print("KERNEL_OK")
</pallas_src>

<mosaic_0001>
module attributes {stable_mosaic.version = 11 : i64} {
  func.func @_label_smooth_kernel(%arg0: i32, %arg1: memref<8x128xf32, #tpu.memory_space<vmem>>, %arg2: memref<8x1xi32, #tpu.memory_space<vmem>>, %arg3: memref<1x1x1xf32, #tpu.memory_space<vmem>>) attributes {dimension_semantics = [#tpu.dimension_semantics<parallel>], iteration_bounds = array<i64: 1>, scalar_prefetch = 0 : i64, scratch_operands = 0 : i64, tpu.core_type = #tpu.core_type<tc>, window_params = [{transform_indices = @transform_0, window_bounds = array<i64: 8, 128>}, {transform_indices = @transform_1, window_bounds = array<i64: 8, 1>}, {transform_indices = @transform_2, window_bounds = array<i64: 1, 1, 1>}]} {
    %c0 = arith.constant 0 : index
    %c0_0 = arith.constant 0 : index
    %0 = vector.load %arg1[%c0, %c0_0] : memref<8x128xf32, #tpu.memory_space<vmem>>, vector<8x128xf32>
    %c0_1 = arith.constant 0 : index
    %c0_2 = arith.constant 0 : index
    %1 = vector.load %arg2[%c0_1, %c0_2] : memref<8x1xi32, #tpu.memory_space<vmem>>, vector<8x1xi32>
    %cst = arith.constant dense<0xFF800000> : vector<8xf32>
    %2 = vector.multi_reduction <maximumf>, %0, %cst [1] : vector<8x128xf32> to vector<8xf32>
    %3 = vector.shape_cast %2 : vector<8xf32> to vector<8x1xf32>
    %4 = vector.broadcast %3 : vector<8x1xf32> to vector<8x128xf32>
    %5 = arith.subf %0, %4 : vector<8x128xf32>
    %6 = math.exp %5 : vector<8x128xf32>
    %cst_3 = arith.constant dense<0.000000e+00> : vector<8xf32>
    %7 = vector.multi_reduction <add>, %6, %cst_3 [1] : vector<8x128xf32> to vector<8xf32>
    %8 = vector.shape_cast %7 : vector<8xf32> to vector<8x1xf32>
    %9 = math.log %8 : vector<8x1xf32>
    %10 = tpu.iota {dimensions = array<i32: 1>} : vector<8x128xi32>
    %11 = vector.broadcast %1 : vector<8x1xi32> to vector<8x128xi32>
    %12 = arith.cmpi eq, %10, %11 : vector<8x128xi32>
    %cst_4 = arith.constant 0.900781273 : f32
    %cst_5 = arith.constant 7.812500e-04 : f32
    %13 = vector.broadcast %cst_4 : f32 to vector<8x128xf32>
    %14 = vector.broadcast %cst_5 : f32 to vector<8x128xf32>
    %15 = arith.select %12, %13, %14 : vector<8x128xi1>, vector<8x128xf32>
    %16 = arith.mulf %15, %5 : vector<8x128xf32>
    %cst_6 = arith.constant dense<0.000000e+00> : vector<8xf32>
    %17 = vector.multi_reduction <add>, %16, %cst_6 [1] : vector<8x128xf32> to vector<8xf32>
    %18 = vector.shape_cast %17 : vector<8xf32> to vector<8x1xf32>
    %19 = arith.subf %9, %18 : vector<8x1xf32>
    %cst_7 = arith.constant dense<0.000000e+00> : vector<1xf32>
    %20 = vector.multi_reduction <add>, %19, %cst_7 [0] : vector<8x1xf32> to vector<1xf32>
    %21 = vector.shape_cast %20 : vector<1xf32> to vector<1x1xf32>
    %22 = vector.shape_cast %21 : vector<1x1xf32> to vector<1x1x1xf32>
    %c0_8 = arith.constant 0 : index
    %c0_9 = arith.constant 0 : index
    %c0_10 = arith.constant 0 : index
    %23 = vector.load %arg3[%c0_8, %c0_9, %c0_10] : memref<1x1x1xf32, #tpu.memory_space<vmem>>, vector<1x1x1xf32>
    tpu.vector_store %arg3[%c0_8, %c0_9, %c0_10], %22 {strides = array<i32>} : memref<1x1x1xf32, #tpu.memory_space<vmem>>, vector<1x1x1xf32>,
    return
  }
  func.func @transform_0(%arg0: i32) -> (i32, i32) {
    %c0_i32 = arith.constant 0 : i32
    %c0_i32_0 = arith.constant 0 : i32
    return %arg0, %c0_i32 : i32, i32
  }
  func.func @transform_1(%arg0: i32) -> (i32, i32) {
    %c0_i32 = arith.constant 0 : i32
    %c0_i32_0 = arith.constant 0 : i32
    return %arg0, %c0_i32 : i32, i32
  }
  func.func @transform_2(%arg0: i32) -> (i32, i32, i32) {
    %c0_i32 = arith.constant 0 : i32
    %c0_i32_0 = arith.constant 0 : i32
    %c0_i32_1 = arith.constant 0 : i32
    return %arg0, %c0_i32, %c0_i32_0 : i32, i32, i32
  }
}

</mosaic_0001>

<llo_original>
// kernel: tpu_custom_call.1
$region0: #{tpu_custom_call.1}
  #allocation0 [shape = 'u32[]', space=smem, size = 0x4, offset = 0x4, fixed_abs, tag = 'smem constant byte address 0x4 - core index']
  #allocation1 [shape = 'u32[144,128]{1,0:T(1,128)}', space=vmem, size = 0x12000, scoped, tag = 'internal scratch']
  %s0 = inlined_call_operand.vmem [shape: f32[8,128], index: 0, kind: input, shape index: {}]
  %s1 = inlined_call_operand.vmem [shape: s32[8,1], index: 1, kind: input, shape index: {}]
  %s2 = inlined_call_operand.hbm [shape: f32[1,1,1], index: 2, kind: output, shape index: {}]
  %s3 = sld [smem:[#allocation0]]
  $region18: #{tpu_custom_call.1} parent=0
    _
  %s5 = ssub.s32 1, %s3
  %s6 = scalar_select 0, %s5, %s3
  $region1: #{tpu_custom_call.1} parent=0
    #allocation2 [shape = 'u8[512]{0}', space=vmem, size = 0x400, scoped, tag = 'output window, operand 0, single buffered']
    #allocation3 [shape = 's32[1]{0}', space=sflag, size = 0x4, scoped, tag = 'scoped memory for tpu_custom_call.1']
    %7 = vsyncpa [#allocation3], 0
    // Predicated region
    $region2: #{tpu_custom_call.1} parent=1 // pred_check
      _
    $region3: #{tpu_custom_call.1} parent=1 // pred_check_branch
      %9 = sbr.rel (0) target = $region5
    $region4: #{tpu_custom_call.1} parent=1 // pred_region
      _
    $region5: #{tpu_custom_call.1} parent=1 // pred_fallthru
      _
    // Predicated region
    $region6: #{tpu_custom_call.1} parent=1 // pred_check
      _
    $region7: #{tpu_custom_call.1} parent=1 // pred_check_branch
      %11 = sbr.rel (0) target = $region9
    $region8: #{tpu_custom_call.1} parent=1 // pred_region
      _
    $region9: #{tpu_custom_call.1} parent=1 // pred_fallthru
      _
    %v12 = vld [vmem:[%s0] sm:$0xff]
    %v13 = vld [vmem:[%s1] sm:$0xff]
    %14 = vmax.xlane.f32.xlu0 %v12
    %v15 = vpop.xlane.xlu0 %14
    %v16 = vsub.f32 %v12, %v15
    %v17 = vmul.f32 %v16, 1.442695
    %v18 = vpow.pop %v17
    %19 = vadd.xlane.f32.xlu0 %v18
    %v20 = vpop.xlane.xlu0 %19
    %v21 = vlog2.pop %v20
    %v22 = vmul.f32 %v21, 0.6931472
    %v23 = vlaneseq
    %v24 = vand.u32 %v23, 127
    %25 = vset.pattern.permute.xlu0 0
    %26 = vperm.xlu0 %25, %v13
    %v27 = vpop.permute.xlu0 %26
    %vm28 = vcmp.eq.s32.totalorder %v24, %v27
    %v29 = vsel %vm28, 0.9007813, 0.00078125
    %v30 = vmul.f32 %v29, %v16
    %31 = vadd.xlane.f32.xlu0 %v30
    %v32 = vpop.xlane.xlu0 %31
    %v33 = vsub.f32 %v22, %v32
    %v34 = vrot.slane %v33, 4
    %v35 = vadd.f32 %v33, %v34
    %v36 = vrot.slane %v35, 2
    %v37 = vadd.f32 %v35, %v36
    %v38 = vrot.slane %v37, 1
    %v39 = vadd.f32 %v37, %v38
    %vm40 = vcmask 0
    %41 = vst.msk [vmem:[#allocation2] sm:$0x1] %vm40, %v39
    // Predicated region
    $region10: #{tpu_custom_call.1} parent=1 // pred_check
      _
    $region11: #{tpu_custom_call.1} parent=1 // pred_check_branch
      %43 = sbr.rel (0) target = $region13
    $region12: #{tpu_custom_call.1} parent=1 // pred_region
      %s45 = ssub.s32 16, 16
      %46 = vsyncadd [#allocation3], %s45
      %s48 = sshll.u32 [#allocation2], 4
      %s49 = int_to_ptr.vmem [resolvable:$true] %s48
      %51 = dma.vmem_to_hbm [thread:$0]  %s49, 16, %s2, [#allocation3]
    $region13: #{tpu_custom_call.1} parent=1 // pred_fallthru
      _
    // Predicated region
    $region14: #{tpu_custom_call.1} parent=1 // pred_check
      _
    $region15: #{tpu_custom_call.1} parent=1 // pred_check_branch
      %53 = sbr.rel (0) target = $region17
    $region16: #{tpu_custom_call.1} parent=1 // pred_region
      %54 = dma.done [#allocation3], 16
    $region17: #{tpu_custom_call.1} parent=1 // pred_fallthru
      _
    %55 = vsyncpa [#allocation3], 1

</llo_original>
